<compile_context>
chip_gen: v7x
topology: tpu7x:2x2x1
jax: 0.10.0
libtpu: 0.0.40
codegen_flags: <defaults>
</compile_context>

<pallas_src>
import jax
import jax.numpy as jnp
from jax.experimental import pallas as pl
from jax.experimental.pallas import tpu as pltpu


def _round_up(x: int, m: int) -> int:
    return ((x + m - 1) // m) * m


def _make_kernel(pack: int):
    """pack = number of edges packed per output row (1 => plain (E, H) layout)."""

    def kernel(attr_ref, wgt_ref, w_attr_ref, w_wgt_ref, bias_ref, out_ref):
        # (tile, pack*A) @ (pack*A, pack*H) on the MXU, f32 accumulation.
        acc = jnp.dot(
            attr_ref[...].astype(jnp.bfloat16),
            w_attr_ref[...],
            preferred_element_type=jnp.float32,
        )
        if pack == 1:
            # rank-1 edge_weight term on the VPU: (tile, 1) * (1, H) broadcast.
            acc = acc + (
                wgt_ref[...].astype(jnp.bfloat16).astype(jnp.float32)
                * w_wgt_ref[...].astype(jnp.float32)
            )
        else:
            # block-diagonal (tile, pack) @ (pack, pack*H): tiny extra MXU work.
            acc = acc + jnp.dot(
                wgt_ref[...].astype(jnp.bfloat16),
                w_wgt_ref[...],
                preferred_element_type=jnp.float32,
            )
        # Exact f32 bias add, identity activation (act='none').
        out_ref[...] = (acc + bias_ref[...]).astype(out_ref.dtype)

    return kernel


def interaction_module_forward(edge_index, edge_attr, edge_weight, params, *,
                               tile_edges=8192, out_dtype=jnp.float32):
    """Returns (edge_index, edge_repr) like InteractionModule.forward."""
    E, A = edge_attr.shape
    H = params["w_attr"].shape[1]

    if E == 0:
        return edge_index, jnp.zeros((0, H), out_dtype)

    # ---- Lane-dense packing factor (p edges per 128-lane output row). ----
    pack = 128 // H if (H <= 128 and 128 % H == 0) else 1
    if pack > 1 and E % pack != 0:
        pack = 1  # fallback keeps arbitrary E exact without any extra HBM pass
    G = E // pack  # rows as seen by the kernel

    # Free, contiguous row-major views (no copies, no casts of E-sized data).
    attr_rows = edge_attr.reshape(G, pack * A)
    wgt_rows = edge_weight.reshape(G, pack)

    # Tiny parameter prep in the wrapper (parameter-sized, negligible traffic).
    eye = jnp.eye(pack, dtype=jnp.float32)
    w_attr_blk = jnp.kron(eye, params["w_attr"].astype(jnp.float32)).astype(jnp.bfloat16)
    w_wgt_blk = jnp.kron(
        eye, params["w_weight"].reshape(1, H).astype(jnp.float32)
    ).astype(jnp.bfloat16)
    bias_row = jnp.tile(params["bias"].astype(jnp.float32).reshape(1, H), (1, pack))

    # ---- Tile selection (sublane-aligned, megacore-friendly, VMEM-safe). ----
    tile_edges_eff = tile_edges if pack > 1 else min(tile_edges, 4096)
    tile_g = max(tile_edges_eff // pack, 16)
    if G >= 512:  # enough work: keep >= 2 grid steps so v7x megacore can shard
        tile_g = min(tile_g, _round_up(pl.cdiv(G, 2), 16))
    tile_g = min(tile_g, _round_up(G, 16))
    tile_g = _round_up(max(tile_g, 16), 16)
    n_tiles = pl.cdiv(G, tile_g)

    cost = pl.CostEstimate(
        flops=2 * E * (A + 1) * H,
        transcendentals=0,
        bytes_accessed=(
            edge_attr.size * edge_attr.dtype.itemsize
            + edge_weight.size * edge_weight.dtype.itemsize
            + E * H * jnp.dtype(out_dtype).itemsize
        ),
    )

    out = pl.pallas_call(
        _make_kernel(pack),
        out_shape=jax.ShapeDtypeStruct((G, pack * H), out_dtype),
        grid_spec=pltpu.PrefetchScalarGridSpec(
            num_scalar_prefetch=0,
            grid=(n_tiles,),
            in_specs=[
                pl.BlockSpec((tile_g, pack * A), lambda i: (i, 0)),   # edge_attr tile
                pl.BlockSpec((tile_g, pack), lambda i: (i, 0)),       # edge_weight tile
                pl.BlockSpec((pack * A, pack * H), lambda i: (0, 0)),  # W_attr (resident)
                pl.BlockSpec((pack, pack * H), lambda i: (0, 0)),      # W_weight (resident)
                pl.BlockSpec((1, pack * H), lambda i: (0, 0)),         # bias (resident, f32)
            ],
            out_specs=pl.BlockSpec((tile_g, pack * H), lambda i: (i, 0)),
        ),
        compiler_params=pltpu.CompilerParams(
            dimension_semantics=("parallel",),
            vmem_limit_bytes=32 * 1024 * 1024,
        ),
        cost_estimate=cost,
    )(attr_rows, wgt_rows, w_attr_blk, w_wgt_blk, bias_row)

    # Pure reinterpretation back to (E, H): contiguous reshape => free.
    return edge_index, out.reshape(E, H)


def _reference(edge_attr, edge_weight, params):
    # Same bf16 quantization of attr/weight operands as the kernel; f32 bias.
    a = edge_attr.astype(jnp.bfloat16).astype(jnp.float32)
    w = edge_weight.reshape(-1, 1).astype(jnp.bfloat16).astype(jnp.float32)
    wa = params["w_attr"].astype(jnp.bfloat16).astype(jnp.float32)
    ww = params["w_weight"].reshape(1, -1).astype(jnp.bfloat16).astype(jnp.float32)
    return a @ wa + w @ ww + params["bias"].astype(jnp.float32)[None, :]


if __name__ == "__main__":
    key = jax.random.PRNGKey(0)
    A, H = 16, 32  # attr features, hidden_channels

    def run_case(case_key, E, bias_scale):
        k1, k2, k3, k4, k5, k6 = jax.random.split(case_key, 6)
        # "interactions(data)" outputs, synthesized deterministically.
        edge_index = jax.random.randint(k1, (2, E), 0, 64, dtype=jnp.int32)
        edge_attr = jax.random.normal(k2, (E, A), dtype=jnp.float32)
        edge_weight = jax.random.normal(k3, (E,), dtype=jnp.float32)
        params = {
            "bias": bias_scale * jax.random.normal(k6, (H,), dtype=jnp.float32),
            "w_attr": jax.random.normal(k4, (A, H), dtype=jnp.float32) * 0.1,
            "w_weight": jax.random.normal(k5, (1, H), dtype=jnp.float32) * 0.1,
        }
        ei_out, repr_out = interaction_module_forward(
            edge_index, edge_attr, edge_weight, params
        )
        repr_out = jax.block_until_ready(repr_out)
        ref = _reference(edge_attr, edge_weight, params)
        assert ei_out.shape == (2, E)
        assert repr_out.shape == (E, H)
        err = float(jnp.max(jnp.abs(repr_out - ref)))
        assert jnp.allclose(repr_out, ref, atol=2e-3, rtol=2e-3), err

    k_a, k_b = jax.random.split(key)
    # E % 4 == 0: lane-dense packed output path, ragged last block.
    run_case(k_a, 700, bias_scale=0.0)   # module __init__ bias = zeros(H)
    # E % 4 != 0: (E, H) fallback path, ragged last block, nonzero f32 bias.
    run_case(k_b, 70, bias_scale=0.1)
    print("KERNEL_OK")
</pallas_src>

<mosaic_0001>
module attributes {stable_mosaic.version = 11 : i64} {
  func.func @kernel(%arg0: i32, %arg1: memref<176x64xf32, #tpu.memory_space<vmem>>, %arg2: memref<176x4xf32, #tpu.memory_space<vmem>>, %arg3: memref<64x128xbf16, #tpu.memory_space<vmem>>, %arg4: memref<4x128xbf16, #tpu.memory_space<vmem>>, %arg5: memref<1x128xf32, #tpu.memory_space<vmem>>, %arg6: memref<176x128xf32, #tpu.memory_space<vmem>>) attributes {dimension_semantics = [#tpu.dimension_semantics<parallel>], iteration_bounds = array<i64: 1>, scalar_prefetch = 0 : i64, scratch_operands = 0 : i64, tpu.core_type = #tpu.core_type<tc>, window_params = [{transform_indices = @transform_0, window_bounds = array<i64: 176, 64>}, {transform_indices = @transform_1, window_bounds = array<i64: 176, 4>}, {pipeline_mode = #tpu.pipeline_mode<synchronous>, transform_indices = @transform_2, window_bounds = array<i64: 64, 128>}, {pipeline_mode = #tpu.pipeline_mode<synchronous>, transform_indices = @transform_3, window_bounds = array<i64: 4, 128>}, {pipeline_mode = #tpu.pipeline_mode<synchronous>, transform_indices = @transform_4, window_bounds = array<i64: 1, 128>}, {transform_indices = @transform_5, window_bounds = array<i64: 176, 128>}]} {
    %c0 = arith.constant 0 : index
    %c0_0 = arith.constant 0 : index
    %0 = vector.load %arg1[%c0, %c0_0] : memref<176x64xf32, #tpu.memory_space<vmem>>, vector<176x64xf32>
    %1 = arith.truncf %0 : vector<176x64xf32> to vector<176x64xbf16>
    %c0_1 = arith.constant 0 : index
    %c0_2 = arith.constant 0 : index
    %2 = vector.load %arg3[%c0_1, %c0_2] : memref<64x128xbf16, #tpu.memory_space<vmem>>, vector<64x128xbf16>
    %cst = arith.constant dense<0.000000e+00> : vector<176x128xf32>
    %3 = tpu.matmul %1, %2, %cst {dimension_numbers = #tpu.dot_dimension_numbers<[1], [0], [0], [1], [0, 0, 1, 1], [], []>} : vector<176x64xbf16>, vector<64x128xbf16>, vector<176x128xf32> -> vector<176x128xf32>
    %c0_3 = arith.constant 0 : index
    %c0_4 = arith.constant 0 : index
    %4 = vector.load %arg2[%c0_3, %c0_4] : memref<176x4xf32, #tpu.memory_space<vmem>>, vector<176x4xf32>
    %5 = arith.truncf %4 : vector<176x4xf32> to vector<176x4xbf16>
    %c0_5 = arith.constant 0 : index
    %c0_6 = arith.constant 0 : index
    %6 = vector.load %arg4[%c0_5, %c0_6] : memref<4x128xbf16, #tpu.memory_space<vmem>>, vector<4x128xbf16>
    %cst_7 = arith.constant dense<0.000000e+00> : vector<176x128xf32>
    %7 = tpu.matmul %5, %6, %cst_7 {dimension_numbers = #tpu.dot_dimension_numbers<[1], [0], [0], [1], [0, 0, 1, 1], [], []>} : vector<176x4xbf16>, vector<4x128xbf16>, vector<176x128xf32> -> vector<176x128xf32>
    %8 = arith.addf %3, %7 : vector<176x128xf32>
    %c0_8 = arith.constant 0 : index
    %c0_9 = arith.constant 0 : index
    %9 = vector.load %arg5[%c0_8, %c0_9] : memref<1x128xf32, #tpu.memory_space<vmem>>, vector<1x128xf32>
    %10 = vector.broadcast %9 : vector<1x128xf32> to vector<176x128xf32>
    %11 = arith.addf %8, %10 : vector<176x128xf32>
    %c0_10 = arith.constant 0 : index
    %c0_11 = arith.constant 0 : index
    %12 = vector.load %arg6[%c0_10, %c0_11] : memref<176x128xf32, #tpu.memory_space<vmem>>, vector<176x128xf32>
    tpu.vector_store %arg6[%c0_10, %c0_11], %11 {strides = array<i32>} : memref<176x128xf32, #tpu.memory_space<vmem>>, vector<176x128xf32>,
    return
  }
  func.func @transform_0(%arg0: i32) -> (i32, i32) {
    %c0_i32 = arith.constant 0 : i32
    %c0_i32_0 = arith.constant 0 : i32
    return %arg0, %c0_i32 : i32, i32
  }
  func.func @transform_1(%arg0: i32) -> (i32, i32) {
    %c0_i32 = arith.constant 0 : i32
    %c0_i32_0 = arith.constant 0 : i32
    return %arg0, %c0_i32 : i32, i32
  }
  func.func @transform_2(%arg0: i32) -> (i32, i32) {
    %c0_i32 = arith.constant 0 : i32
    %c0_i32_0 = arith.constant 0 : i32
    %c0_i32_1 = arith.constant 0 : i32
    return %c0_i32, %c0_i32_0 : i32, i32
  }
  func.func @transform_3(%arg0: i32) -> (i32, i32) {
    %c0_i32 = arith.constant 0 : i32
    %c0_i32_0 = arith.constant 0 : i32
    %c0_i32_1 = arith.constant 0 : i32
    return %c0_i32, %c0_i32_0 : i32, i32
  }
  func.func @transform_4(%arg0: i32) -> (i32, i32) {
    %c0_i32 = arith.constant 0 : i32
    %c0_i32_0 = arith.constant 0 : i32
    %c0_i32_1 = arith.constant 0 : i32
    return %c0_i32, %c0_i32_0 : i32, i32
  }
  func.func @transform_5(%arg0: i32) -> (i32, i32) {
    %c0_i32 = arith.constant 0 : i32
    %c0_i32_0 = arith.constant 0 : i32
    return %arg0, %c0_i32 : i32, i32
  }
}

</mosaic_0001>

<llo_original>
// kernel: tpu_custom_call.1
$region0: #{tpu_custom_call.1}
  #allocation0 [shape = 'u32[]', space=smem, size = 0x4, offset = 0x4, fixed_abs, tag = 'smem constant byte address 0x4 - core index']
  #allocation1 [shape = 'u32[144,128]{1,0:T(1,128)}', space=vmem, size = 0x12000, scoped, tag = 'internal scratch']
  %s0 = inlined_call_operand.vmem [shape: f32[175,64], index: 0, kind: input, shape index: {}]
  %s1 = inlined_call_operand.vmem [shape: f32[175,4], index: 1, kind: input, shape index: {}]
  %s2 = inlined_call_operand.vmem [shape: bf16[64,128], index: 2, kind: input, shape index: {}]
  %s3 = inlined_call_operand.vmem [shape: bf16[4,128], index: 3, kind: input, shape index: {}]
  %s4 = inlined_call_operand.vmem [shape: f32[1,128], index: 4, kind: input, shape index: {}]
  %s5 = inlined_call_operand.hbm [shape: f32[175,128], index: 5, kind: output, shape index: {}]
  %s6 = sld [smem:[#allocation0]]
  $region30: #{tpu_custom_call.1} parent=0
    _
  %s8 = ssub.s32 1, %s6
  %s9 = scalar_select 0, %s8, %s6
  $region1: #{tpu_custom_call.1} parent=0
    #allocation2 [shape = 'u8[90112]{0}', space=vmem, size = 0x16000, scoped, tag = 'output window, operand 0, single buffered']
    #allocation3 [shape = 's32[1]{0}', space=sflag, size = 0x4, scoped, tag = 'scoped memory for tpu_custom_call.1']
    %10 = vsyncpa [#allocation3], 0
    // Predicated region
    $region2: #{tpu_custom_call.1} parent=1 // pred_check
      _
    $region3: #{tpu_custom_call.1} parent=1 // pred_check_branch
      %12 = sbr.rel (0) target = $region5
    $region4: #{tpu_custom_call.1} parent=1 // pred_region
      _
    $region5: #{tpu_custom_call.1} parent=1 // pred_fallthru
      _
    // Predicated region
    $region6: #{tpu_custom_call.1} parent=1 // pred_check
      _
    $region7: #{tpu_custom_call.1} parent=1 // pred_check_branch
      %14 = sbr.rel (0) target = $region9
    $region8: #{tpu_custom_call.1} parent=1 // pred_region
      _
    $region9: #{tpu_custom_call.1} parent=1 // pred_fallthru
      _
    // Predicated region
    $region10: #{tpu_custom_call.1} parent=1 // pred_check
      _
    $region11: #{tpu_custom_call.1} parent=1 // pred_check_branch
      %16 = sbr.rel (0) target = $region13
    $region12: #{tpu_custom_call.1} parent=1 // pred_region
      _
    $region13: #{tpu_custom_call.1} parent=1 // pred_fallthru
      _
    // Predicated region
    $region14: #{tpu_custom_call.1} parent=1 // pred_check
      _
    $region15: #{tpu_custom_call.1} parent=1 // pred_check_branch
      %18 = sbr.rel (0) target = $region17
    $region16: #{tpu_custom_call.1} parent=1 // pred_region
      _
    $region17: #{tpu_custom_call.1} parent=1 // pred_fallthru
      _
    // Predicated region
    $region18: #{tpu_custom_call.1} parent=1 // pred_check
      _
    $region19: #{tpu_custom_call.1} parent=1 // pred_check_branch
      %20 = sbr.rel (0) target = $region21
    $region20: #{tpu_custom_call.1} parent=1 // pred_region
      _
    $region21: #{tpu_custom_call.1} parent=1 // pred_fallthru
      _
    %v22 = vld [vmem:[%s0] sm:$0xff]
    %v23 = vld [vmem:[%s0 + $0x8] sm:$0xff]
    %v24 = vld [vmem:[%s0 + $0x10] sm:$0xff]
    %v25 = vld [vmem:[%s0 + $0x18] sm:$0xff]
    %v26 = vld [vmem:[%s0 + $0x20] sm:$0xff]
    %v27 = vld [vmem:[%s0 + $0x28] sm:$0xff]
    %v28 = vld [vmem:[%s0 + $0x30] sm:$0xff]
    %v29 = vld [vmem:[%s0 + $0x38] sm:$0xff]
    %v30 = vld [vmem:[%s0 + $0x40] sm:$0xff]
    %v31 = vld [vmem:[%s0 + $0x48] sm:$0xff]
    %v32 = vld [vmem:[%s0 + $0x50] sm:$0xff]
    %v33 = vld [vmem:[%s0 + $0x58] sm:$0xff]
    %v34 = vld [vmem:[%s0 + $0x60] sm:$0xff]
    %v35 = vld [vmem:[%s0 + $0x68] sm:$0xff]
    %v36 = vld [vmem:[%s0 + $0x70] sm:$0xff]
    %v37 = vld [vmem:[%s0 + $0x78] sm:$0xff]
    %v38 = vld [vmem:[%s0 + $0x80] sm:$0xff]
    %v39 = vld [vmem:[%s0 + $0x88] sm:$0xff]
    %v40 = vld [vmem:[%s0 + $0x90] sm:$0xff]
    %v41 = vld [vmem:[%s0 + $0x98] sm:$0xff]
    %v42 = vld [vmem:[%s0 + $0xa0] sm:$0xff]
    %v43 = vld [vmem:[%s0 + $0xa8] sm:$0xff]
    %v44 = vpack.c.bf16 %v23, %v22
    %v45 = vpack.c.bf16 %v25, %v24
    %v46 = vpack.c.bf16 %v27, %v26
    %v47 = vpack.c.bf16 %v29, %v28
    %v48 = vpack.c.bf16 %v31, %v30
    %v49 = vpack.c.bf16 %v33, %v32
    %v50 = vpack.c.bf16 %v35, %v34
    %v51 = vpack.c.bf16 %v37, %v36
    %v52 = vpack.c.bf16 %v39, %v38
    %v53 = vpack.c.bf16 %v41, %v40
    %v54 = vpack.c.bf16 %v43, %v42
    %v55 = vld [vmem:[%s2] sm:$0xf]
    %v56 = vld [vmem:[%s2 + $0x4] sm:$0xf]
    %v57 = vld [vmem:[%s2 + $0x8] sm:$0xf]
    %v58 = vld [vmem:[%s2 + $0xc] sm:$0xf]
    %v59 = vld [vmem:[%s2 + $0x10] sm:$0xf]
    %v60 = vld [vmem:[%s2 + $0x14] sm:$0xf]
    %v61 = vld [vmem:[%s2 + $0x18] sm:$0xf]
    %v62 = vld [vmem:[%s2 + $0x1c] sm:$0xf]
    %v63 = vld [vmem:[%s1] sm:$0xff]
    %v64 = vld [vmem:[%s1 + $0x8] sm:$0xff]
    %v65 = vld [vmem:[%s1 + $0x10] sm:$0xff]
    %v66 = vld [vmem:[%s1 + $0x18] sm:$0xff]
    %v67 = vld [vmem:[%s1 + $0x20] sm:$0xff]
    %v68 = vld [vmem:[%s1 + $0x28] sm:$0xff]
    %v69 = vld [vmem:[%s1 + $0x30] sm:$0xff]
    %v70 = vld [vmem:[%s1 + $0x38] sm:$0xff]
    %v71 = vld [vmem:[%s1 + $0x40] sm:$0xff]
    %v72 = vld [vmem:[%s1 + $0x48] sm:$0xff]
    %v73 = vld [vmem:[%s1 + $0x50] sm:$0xff]
    %v74 = vld [vmem:[%s1 + $0x58] sm:$0xff]
    %v75 = vld [vmem:[%s1 + $0x60] sm:$0xff]
    %v76 = vld [vmem:[%s1 + $0x68] sm:$0xff]
    %v77 = vld [vmem:[%s1 + $0x70] sm:$0xff]
    %v78 = vld [vmem:[%s1 + $0x78] sm:$0xff]
    %v79 = vld [vmem:[%s1 + $0x80] sm:$0xff]
    %v80 = vld [vmem:[%s1 + $0x88] sm:$0xff]
    %v81 = vld [vmem:[%s1 + $0x90] sm:$0xff]
    %v82 = vld [vmem:[%s1 + $0x98] sm:$0xff]
    %v83 = vld [vmem:[%s1 + $0xa0] sm:$0xff]
    %v84 = vld [vmem:[%s1 + $0xa8] sm:$0xff]
    %v85 = vpack.c.bf16 %v64, %v63
    %v86 = vpack.c.bf16 %v66, %v65
    %v87 = vpack.c.bf16 %v68, %v67
    %v88 = vpack.c.bf16 %v70, %v69
    %v89 = vpack.c.bf16 %v72, %v71
    %v90 = vpack.c.bf16 %v74, %v73
    %v91 = vpack.c.bf16 %v76, %v75
    %v92 = vpack.c.bf16 %v78, %v77
    %v93 = vpack.c.bf16 %v80, %v79
    %v94 = vpack.c.bf16 %v82, %v81
    %v95 = vpack.c.bf16 %v84, %v83
    %v96 = vld [vmem:[%s3] sm:$0x3]
    %vm97 = vcmask 31744
    %v99 = vsel %vm97, %v85, 0
    %v102 = vsel %vm97, %v86, 0
    %v105 = vsel %vm97, %v87, 0
    %v108 = vsel %vm97, %v88, 0
    %v111 = vsel %vm97, %v89, 0
    %v114 = vsel %vm97, %v90, 0
    %v117 = vsel %vm97, %v91, 0
    %v120 = vsel %vm97, %v92, 0
    %v123 = vsel %vm97, %v93, 0
    %v126 = vsel %vm97, %v94, 0
    %v129 = vsel %vm97, %v95, 0
    %vm131 = vcmask 1041408
    %v133 = vsel %vm131, %v96, 0
    %135 = vmatprep.subr.bf16.mxu0 0
    %136 = vmatpush1.bf16.msra.mxu0 %v133
    %137 = vmatprep.subr.bf16.mxu0 0
    %138 = vmatpush1.bf16.msra.mxu0 0
    %139 = vmatprep.subr.bf16.mxu0 0
    %140 = vmatpush1.bf16.msra.mxu0 0
    %141 = vmatprep.subr.bf16.mxu0 0
    %142 = vmatpush1.bf16.msra.mxu0 0
    %143 = vmatprep.subr.bf16.mxu0 0
    %144 = vmatpush1.bf16.msra.mxu0 0
    %145 = vmatprep.subr.bf16.mxu0 0
    %146 = vmatpush1.bf16.msra.mxu0 0
    %147 = vmatprep.subr.bf16.mxu0 0
    %148 = vmatpush1.bf16.msra.mxu0 0
    %149 = vmatprep.subr.bf16.mxu0 0
    %150 = vmatpush1.bf16.msra.mxu0 0
    %151 = vmatprep.subr.bf16.mxu0 0
    %152 = vmatpush1.bf16.msra.mxu0 0
    %153 = vmatprep.subr.bf16.mxu0 0
    %154 = vmatpush1.bf16.msra.mxu0 0
    %155 = vmatprep.subr.bf16.mxu0 0
    %156 = vmatpush1.bf16.msra.mxu0 0
    %157 = vmatprep.subr.bf16.mxu0 0
    %158 = vmatpush1.bf16.msra.mxu0 0
    %159 = vmatprep.subr.bf16.mxu0 0
    %160 = vmatpush1.bf16.msra.mxu0 0
    %161 = vmatprep.subr.bf16.mxu0 0
    %162 = vmatpush1.bf16.msra.mxu0 0
    %163 = vmatprep.subr.bf16.mxu0 0
    %164 = vmatpush1.bf16.msra.mxu0 0
    %165 = vmatprep.subr.bf16.mxu0 0
    %166 = vmatpush1.bf16.msra.mxu0 0
    %167 = vmatprep.mubr.bf16.mxu0 0
    %168 = vmatmul.mubr.bf16.gmra.mrb[0].mxu0 %v99
    %v169 = vpop.f32.mrb[0].mxu0
    %v170 = vadd.f32 0.0, %v169
    %v171 = vpop.f32.mrb[0].mxu0
    %v172 = vpop.f32.mrb[0].mxu0
    %v173 = vadd.f32 0.0, %v172
    %v174 = vpop.f32.mrb[0].mxu0
    %175 = vmatprep.mubr.bf16.mxu0 0
    %176 = vmatmul.mubr.bf16.gmra.mrb[0].mxu0 %v102
    %v177 = vpop.f32.mrb[0].mxu0
    %v178 = vadd.f32 0.0, %v177
    %v179 = vpop.f32.mrb[0].mxu0
    %v180 = vpop.f32.mrb[0].mxu0
    %v181 = vadd.f32 0.0, %v180
    %v182 = vpop.f32.mrb[0].mxu0
    %183 = vmatprep.mubr.bf16.mxu0 0
    %184 = vmatmul.mubr.bf16.gmra.mrb[0].mxu0 %v105
    %v185 = vpop.f32.mrb[0].mxu0
    %v186 = vadd.f32 0.0, %v185
    %v187 = vpop.f32.mrb[0].mxu0
    %v188 = vpop.f32.mrb[0].mxu0
    %v189 = vadd.f32 0.0, %v188
    %v190 = vpop.f32.mrb[0].mxu0
    %191 = vmatprep.mubr.bf16.mxu0 0
    %192 = vmatmul.mubr.bf16.gmra.mrb[0].mxu0 %v108
    %v193 = vpop.f32.mrb[0].mxu0
    %v194 = vadd.f32 0.0, %v193
    %v195 = vpop.f32.mrb[0].mxu0
    %v196 = vpop.f32.mrb[0].mxu0
    %v197 = vadd.f32 0.0, %v196
    %v198 = vpop.f32.mrb[0].mxu0
    %199 = vmatprep.mubr.bf16.mxu0 0
    %200 = vmatmul.mubr.bf16.gmra.mrb[0].mxu0 %v111
    %v201 = vpop.f32.mrb[0].mxu0
    %v202 = vadd.f32 0.0, %v201
    %v203 = vpop.f32.mrb[0].mxu0
    %v204 = vpop.f32.mrb[0].mxu0
    %v205 = vadd.f32 0.0, %v204
    %v206 = vpop.f32.mrb[0].mxu0
    %207 = vmatprep.mubr.bf16.mxu0 0
    %208 = vmatmul.mubr.bf16.gmra.mrb[0].mxu0 %v114
    %v209 = vpop.f32.mrb[0].mxu0
    %v210 = vadd.f32 0.0, %v209
    %v211 = vpop.f32.mrb[0].mxu0
    %v212 = vpop.f32.mrb[0].mxu0
    %v213 = vadd.f32 0.0, %v212
    %v214 = vpop.f32.mrb[0].mxu0
    %215 = vmatprep.mubr.bf16.mxu0 0
    %216 = vmatmul.mubr.bf16.gmra.mrb[0].mxu0 %v117
    %v217 = vpop.f32.mrb[0].mxu0
    %v218 = vadd.f32 0.0, %v217
    %v219 = vpop.f32.mrb[0].mxu0
    %v220 = vpop.f32.mrb[0].mxu0
    %v221 = vadd.f32 0.0, %v220
    %v222 = vpop.f32.mrb[0].mxu0
    %223 = vmatprep.mubr.bf16.mxu0 0
    %224 = vmatmul.mubr.bf16.gmra.mrb[0].mxu0 %v120
    %v225 = vpop.f32.mrb[0].mxu0
    %v226 = vadd.f32 0.0, %v225
    %v227 = vpop.f32.mrb[0].mxu0
    %v228 = vpop.f32.mrb[0].mxu0
    %v229 = vadd.f32 0.0, %v228
    %v230 = vpop.f32.mrb[0].mxu0
    %231 = vmatprep.mubr.bf16.mxu0 0
    %232 = vmatmul.mubr.bf16.gmra.mrb[0].mxu0 %v123
    %v233 = vpop.f32.mrb[0].mxu0
    %v234 = vadd.f32 0.0, %v233
    %v235 = vpop.f32.mrb[0].mxu0
    %v236 = vpop.f32.mrb[0].mxu0
    %v237 = vadd.f32 0.0, %v236
    %v238 = vpop.f32.mrb[0].mxu0
    %239 = vmatprep.mubr.bf16.mxu0 0
    %240 = vmatmul.mubr.bf16.gmra.mrb[0].mxu0 %v126
    %v241 = vpop.f32.mrb[0].mxu0
    %v242 = vadd.f32 0.0, %v241
    %v243 = vpop.f32.mrb[0].mxu0
    %v244 = vpop.f32.mrb[0].mxu0
    %v245 = vadd.f32 0.0, %v244
    %v246 = vpop.f32.mrb[0].mxu0
    %247 = vmatprep.mubr.bf16.mxu0 0
    %248 = vmatmul.mubr.bf16.gmra.mrb[0].mxu0 %v129
    %v249 = vpop.f32.mrb[0].mxu0
    %v250 = vadd.f32 0.0, %v249
    %v251 = vpop.f32.mrb[0].mxu0
    %v252 = vpop.f32.mrb[0].mxu0
    %v253 = vadd.f32 0.0, %v252
    %v254 = vpop.f32.mrb[0].mxu0
    %255 = vdwg.mxu0
    %v264 = vunpack.c.l.b16 %v55
    %v265 = vunpack.c.l.b16 %v56
    %v266 = vunpack.c.l.b16 %v57
    %v267 = vunpack.c.l.b16 %v58
    %v268 = vunpack.c.l.b16 %v59
    %v269 = vunpack.c.l.b16 %v60
    %v270 = vunpack.c.l.b16 %v61
    %v271 = vunpack.c.l.b16 %v62
    %v272 = vpack.c.b16 %v265, %v264
    %v273 = vpack.c.b16 %v267, %v266
    %v274 = vpack.c.b16 %v269, %v268
    %v275 = vpack.c.b16 %v271, %v270
    %vm280 = vcmask 523264
    %v282 = vsel %vm280, %v44, 0
    %v285 = vsel %vm280, %v45, 0
    %v288 = vsel %vm280, %v46, 0
    %v291 = vsel %vm280, %v47, 0
    %v294 = vsel %vm280, %v48, 0
    %v297 = vsel %vm280, %v49, 0
    %v300 = vsel %vm280, %v50, 0
    %v303 = vsel %vm280, %v51, 0
    %v306 = vsel %vm280, %v52, 0
    %v309 = vsel %vm280, %v53, 0
    %v312 = vsel %vm280, %v54, 0
    %314 = vmatprep.subr.bf16.mxu0 0
    %315 = vmatpush1.bf16.msra.mxu0 %v272
    %316 = vmatprep.subr.bf16.mxu0 0
    %317 = vmatpush1.bf16.msra.mxu0 %v273
    %318 = vmatprep.subr.bf16.mxu0 0
    %319 = vmatpush1.bf16.msra.mxu0 %v274
    %320 = vmatprep.subr.bf16.mxu0 0
    %321 = vmatpush1.bf16.msra.mxu0 %v275
    %322 = vmatprep.subr.bf16.mxu0 0
    %323 = vmatpush1.bf16.msra.mxu0 0
    %324 = vmatprep.subr.bf16.mxu0 0
    %325 = vmatpush1.bf16.msra.mxu0 0
    %326 = vmatprep.subr.bf16.mxu0 0
    %327 = vmatpush1.bf16.msra.mxu0 0
    %328 = vmatprep.subr.bf16.mxu0 0
    %329 = vmatpush1.bf16.msra.mxu0 0
    %330 = vmatprep.subr.bf16.mxu0 0
    %331 = vmatpush1.bf16.msra.mxu0 0
    %332 = vmatprep.subr.bf16.mxu0 0
    %333 = vmatpush1.bf16.msra.mxu0 0
    %334 = vmatprep.subr.bf16.mxu0 0
    %335 = vmatpush1.bf16.msra.mxu0 0
    %336 = vmatprep.subr.bf16.mxu0 0
    %337 = vmatpush1.bf16.msra.mxu0 0
    %338 = vmatprep.subr.bf16.mxu0 0
    %339 = vmatpush1.bf16.msra.mxu0 0
    %340 = vmatprep.subr.bf16.mxu0 0
    %341 = vmatpush1.bf16.msra.mxu0 0
    %342 = vmatprep.subr.bf16.mxu0 0
    %343 = vmatpush1.bf16.msra.mxu0 0
    %344 = vmatprep.subr.bf16.mxu0 0
    %345 = vmatpush1.bf16.msra.mxu0 0
    %346 = vmatprep.mubr.bf16.mxu0 0
    %347 = vmatmul.mubr.bf16.gmra.mrb[0].mxu0 %v282
    %v348 = vpop.f32.mrb[0].mxu0
    %v349 = vadd.f32 %v170, %v348
    %v350 = vpop.f32.mrb[0].mxu0
    %v351 = vpop.f32.mrb[0].mxu0
    %v352 = vadd.f32 %v173, %v351
    %v353 = vpop.f32.mrb[0].mxu0
    %354 = vmatprep.mubr.bf16.mxu0 0
    %355 = vmatmul.mubr.bf16.gmra.mrb[0].mxu0 %v285
    %v356 = vpop.f32.mrb[0].mxu0
    %v357 = vadd.f32 %v178, %v356
    %v358 = vpop.f32.mrb[0].mxu0
    %v359 = vpop.f32.mrb[0].mxu0
    %v360 = vadd.f32 %v181, %v359
    %v361 = vpop.f32.mrb[0].mxu0
    %362 = vmatprep.mubr.bf16.mxu0 0
    %363 = vmatmul.mubr.bf16.gmra.mrb[0].mxu0 %v288
    %v364 = vpop.f32.mrb[0].mxu0
    %v365 = vadd.f32 %v186, %v364
    %v366 = vpop.f32.mrb[0].mxu0
    %v367 = vpop.f32.mrb[0].mxu0
    %v368 = vadd.f32 %v189, %v367
    %v369 = vpop.f32.mrb[0].mxu0
    %370 = vmatprep.mubr.bf16.mxu0 0
    %371 = vmatmul.mubr.bf16.gmra.mrb[0].mxu0 %v291
    %v372 = vpop.f32.mrb[0].mxu0
    %v373 = vadd.f32 %v194, %v372
    %v374 = vpop.f32.mrb[0].mxu0
    %v375 = vpop.f32.mrb[0].mxu0
    %v376 = vadd.f32 %v197, %v375
    %v377 = vpop.f32.mrb[0].mxu0
    %378 = vmatprep.mubr.bf16.mxu0 0
    %379 = vmatmul.mubr.bf16.gmra.mrb[0].mxu0 %v294
    %v380 = vpop.f32.mrb[0].mxu0
    %v381 = vadd.f32 %v202, %v380
    %v382 = vpop.f32.mrb[0].mxu0
    %v383 = vpop.f32.mrb[0].mxu0
    %v384 = vadd.f32 %v205, %v383
    %v385 = vpop.f32.mrb[0].mxu0
    %386 = vmatprep.mubr.bf16.mxu0 0
    %387 = vmatmul.mubr.bf16.gmra.mrb[0].mxu0 %v297
    %v388 = vpop.f32.mrb[0].mxu0
    %v389 = vadd.f32 %v210, %v388
    %v390 = vpop.f32.mrb[0].mxu0
    %v391 = vpop.f32.mrb[0].mxu0
    %v392 = vadd.f32 %v213, %v391
    %v393 = vpop.f32.mrb[0].mxu0
    %394 = vmatprep.mubr.bf16.mxu0 0
    %395 = vmatmul.mubr.bf16.gmra.mrb[0].mxu0 %v300
    %v396 = vpop.f32.mrb[0].mxu0
    %v397 = vadd.f32 %v218, %v396
    %v398 = vpop.f32.mrb[0].mxu0
    %v399 = vpop.f32.mrb[0].mxu0
    %v400 = vadd.f32 %v221, %v399
    %v401 = vpop.f32.mrb[0].mxu0
    %402 = vmatprep.mubr.bf16.mxu0 0
    %403 = vmatmul.mubr.bf16.gmra.mrb[0].mxu0 %v303
    %v404 = vpop.f32.mrb[0].mxu0
    %v405 = vadd.f32 %v226, %v404
    %v406 = vpop.f32.mrb[0].mxu0
    %v407 = vpop.f32.mrb[0].mxu0
    %v408 = vadd.f32 %v229, %v407
    %v409 = vpop.f32.mrb[0].mxu0
    %410 = vmatprep.mubr.bf16.mxu0 0
    %411 = vmatmul.mubr.bf16.gmra.mrb[0].mxu0 %v306
    %v412 = vpop.f32.mrb[0].mxu0
    %v413 = vadd.f32 %v234, %v412
    %v414 = vpop.f32.mrb[0].mxu0
    %v415 = vpop.f32.mrb[0].mxu0
    %v416 = vadd.f32 %v237, %v415
    %v417 = vpop.f32.mrb[0].mxu0
    %418 = vmatprep.mubr.bf16.mxu0 0
    %419 = vmatmul.mubr.bf16.gmra.mrb[0].mxu0 %v309
    %v420 = vpop.f32.mrb[0].mxu0
    %v421 = vadd.f32 %v242, %v420
    %v422 = vpop.f32.mrb[0].mxu0
    %v423 = vpop.f32.mrb[0].mxu0
    %v424 = vadd.f32 %v245, %v423
    %v425 = vpop.f32.mrb[0].mxu0
    %426 = vmatprep.mubr.bf16.mxu0 0
    %427 = vmatmul.mubr.bf16.gmra.mrb[0].mxu0 %v312
    %v428 = vpop.f32.mrb[0].mxu0
    %v429 = vadd.f32 %v250, %v428
    %v430 = vpop.f32.mrb[0].mxu0
    %v431 = vpop.f32.mrb[0].mxu0
    %v432 = vadd.f32 %v253, %v431
    %v433 = vpop.f32.mrb[0].mxu0
    %434 = vdwg.mxu0
    %v435 = vld [vmem:[%s4] sm:$0x1]
    %v437 = vlaneseq
    %v438 = vshrl.u32 %v437, 7
    %v439 = vsub.s32 0, %v438
    %v440 = vrot.slane %v435, %v439
    %v442 = vadd.f32 %v349, %v440
    %v443 = vadd.f32 %v352, %v440
    %v444 = vadd.f32 %v357, %v440
    %v445 = vadd.f32 %v360, %v440
    %v446 = vadd.f32 %v365, %v440
    %v447 = vadd.f32 %v368, %v440
    %v448 = vadd.f32 %v373, %v440
    %v449 = vadd.f32 %v376, %v440
    %v450 = vadd.f32 %v381, %v440
    %v451 = vadd.f32 %v384, %v440
    %v452 = vadd.f32 %v389, %v440
    %v453 = vadd.f32 %v392, %v440
    %v454 = vadd.f32 %v397, %v440
    %v455 = vadd.f32 %v400, %v440
    %v456 = vadd.f32 %v405, %v440
    %v457 = vadd.f32 %v408, %v440
    %v458 = vadd.f32 %v413, %v440
    %v459 = vadd.f32 %v416, %v440
    %v460 = vadd.f32 %v421, %v440
    %v461 = vadd.f32 %v424, %v440
    %v462 = vadd.f32 %v429, %v440
    %v463 = vadd.f32 %v432, %v440
    %464 = vst [vmem:[#allocation2] sm:$0xff] %v442
    %465 = vst [vmem:[#allocation2 + $0x8] sm:$0xff] %v443
    %466 = vst [vmem:[#allocation2 + $0x10] sm:$0xff] %v444
    %467 = vst [vmem:[#allocation2 + $0x18] sm:$0xff] %v445
    %468 = vst [vmem:[#allocation2 + $0x20] sm:$0xff] %v446
    %469 = vst [vmem:[#allocation2 + $0x28] sm:$0xff] %v447
    %470 = vst [vmem:[#allocation2 + $0x30] sm:$0xff] %v448
    %471 = vst [vmem:[#allocation2 + $0x38] sm:$0xff] %v449
    %472 = vst [vmem:[#allocation2 + $0x40] sm:$0xff] %v450
    %473 = vst [vmem:[#allocation2 + $0x48] sm:$0xff] %v451
    %474 = vst [vmem:[#allocation2 + $0x50] sm:$0xff] %v452
    %475 = vst [vmem:[#allocation2 + $0x58] sm:$0xff] %v453
    %476 = vst [vmem:[#allocation2 + $0x60] sm:$0xff] %v454
    %477 = vst [vmem:[#allocation2 + $0x68] sm:$0xff] %v455
    %478 = vst [vmem:[#allocation2 + $0x70] sm:$0xff] %v456
    %479 = vst [vmem:[#allocation2 + $0x78] sm:$0xff] %v457
    %480 = vst [vmem:[#allocation2 + $0x80] sm:$0xff] %v458
    %481 = vst [vmem:[#allocation2 + $0x88] sm:$0xff] %v459
    %482 = vst [vmem:[#allocation2 + $0x90] sm:$0xff] %v460
    %483 = vst [vmem:[#allocation2 + $0x98] sm:$0xff] %v461
    %484 = vst [vmem:[#allocation2 + $0xa0] sm:$0xff] %v462
    %485 = vst [vmem:[#allocation2 + $0xa8] sm:$0xff] %v463
    // Predicated region
    $region22: #{tpu_custom_call.1} parent=1 // pred_check
      _
    $region23: #{tpu_custom_call.1} parent=1 // pred_check_branch
      %487 = sbr.rel (0) target = $region25
    $region24: #{tpu_custom_call.1} parent=1 // pred_region
      %s489 = ssub.s32 2816, 2816
      %490 = vsyncadd [#allocation3], %s489
      %s491 = sshll.u32 [#allocation2], 4
      %s492 = int_to_ptr.vmem [resolvable:$true] %s491
      %497 = dma.vmem_to_hbm [thread:$0]  %s492, 2816, %s5, [#allocation3], 128, 128, 8
    $region25: #{tpu_custom_call.1} parent=1 // pred_fallthru
      _
    // Predicated region
    $region26: #{tpu_custom_call.1} parent=1 // pred_check
      _
    $region27: #{tpu_custom_call.1} parent=1 // pred_check_branch
      %499 = sbr.rel (0) target = $region29
    $region28: #{tpu_custom_call.1} parent=1 // pred_region
      %500 = dma.done [#allocation3], 2816
    $region29: #{tpu_custom_call.1} parent=1 // pred_fallthru
      _
    %501 = vsyncpa [#allocation3], 1

</llo_original>
